<compile_context>
chip_gen: v7x
topology: tpu7x:2x2x1
jax: 0.10.0
libtpu: 0.0.40
codegen_flags: <defaults>
</compile_context>

<pallas_src>
import functools

import jax
import jax.numpy as jnp
import numpy as np
from jax.experimental import pallas as pl
from jax.experimental.pallas import tpu as pltpu


def _gsa_kernel(x_ref, w1_ref, w2_ref, c2_ref, o_ref, acc_ref, *,
                n_total, tn, acc_lanes):
    """One grid step = one (batch, N-tile) pair.  Channels-on-sublanes layout.

    x_ref   : (1, C_aug, TN) bf16   [xyz ; feats ; ones] tile (N on lanes)
    w1_ref  : (D1, C_aug)    bf16   BN-folded layer-1 weight, bias as last col
    w2_ref  : (D2, D1)       bf16   BN-folded layer-2 weight
    c2_ref  : (D2, 1)        f32    BN-folded layer-2 bias
    o_ref   : (1, D2, 1)     f32    per-batch global max (written on last tile)
    acc_ref : (D2, acc_lanes) f32   running per-lane max across N tiles
    """
    n_idx = pl.program_id(1)
    last = pl.num_programs(1) - 1

    @pl.when(n_idx == 0)
    def _():
        acc_ref[...] = jnp.full(acc_ref.shape, -jnp.inf, acc_ref.dtype)

    # Layer 1: single merged 1x1 conv (bias folded in via the ones row), ReLU.
    #                                                           -> (D1, TN)
    h = jnp.dot(w1_ref[...], x_ref[0], preferred_element_type=jnp.float32)
    h = jnp.maximum(h, 0.0).astype(jnp.bfloat16)

    # Layer 2: 1x1 conv with folded BN, ReLU.                   -> (D2, TN)
    # TODO(synk): on v5e, if the bundle dump shows vst saturation at large TN,
    # chunk this layer over 512-lane groups with an unrolled fori_loop so the
    # f32 intermediates stay register-resident.
    h = jnp.dot(w2_ref[...], h, preferred_element_type=jnp.float32) + c2_ref[...]
    h = jnp.maximum(h, 0.0)

    def accumulate(hv):
        if acc_lanes == 1:
            part = jnp.max(hv, axis=-1, keepdims=True)          # (D2, 1)
        else:
            # Pure-VPU elementwise maxes over 128-aligned lane groups; the
            # cross-lane (XLU) reduce is deferred to the last tile.
            part = hv[:, 0:acc_lanes]
            for g in range(1, tn // acc_lanes):
                part = jnp.maximum(part, hv[:, g * acc_lanes:(g + 1) * acc_lanes])
        acc_ref[...] = jnp.maximum(acc_ref[...], part)

    if n_total % tn != 0:
        # Only the last tile has out-of-range columns; keep full tiles clean.
        @pl.when(n_idx == last)
        def _():
            col = jax.lax.broadcasted_iota(jnp.int32, h.shape, 1)
            accumulate(jnp.where(n_idx * tn + col < n_total, h, -jnp.inf))

        @pl.when(n_idx != last)
        def _():
            accumulate(h)
    else:
        accumulate(h)

    @pl.when(n_idx == last)
    def _():
        o_ref[0] = jnp.max(acc_ref[...], axis=-1, keepdims=True).astype(o_ref.dtype)


def global_abstraction_forward(points, feats, fused_params, *, tn_max=8192):
    """points: (B, 3, N), feats: (B, C, N).  Returns (B, D_out, 1) float32."""
    assert tn_max % 128 == 0
    w1a, w2, c2 = fused_params
    B, _, N = points.shape
    D1, D2 = w1a.shape[0], w2.shape[0]
    C_aug = w1a.shape[1]                      # 3 + C_feat + 1 (ones/bias row)

    # Single merged bf16 operand: [xyz ; feats ; ones].  The ones row pairs
    # with the bias column of w1a so the layer-1 bias rides the MXU.
    x = jnp.concatenate(
        [points.astype(jnp.bfloat16),
         feats.astype(jnp.bfloat16),
         jnp.ones((B, 1, N), jnp.bfloat16)], axis=1)            # (B, C_aug, N)
    assert x.shape[1] == C_aug

    # Either one full-extent block per batch (small N) or 128-aligned N tiles.
    tn = N if N <= tn_max else tn_max
    nt = pl.cdiv(N, tn)
    acc_lanes = 128 if tn % 128 == 0 else 1

    kernel = functools.partial(_gsa_kernel, n_total=N, tn=tn, acc_lanes=acc_lanes)
    const = lambda b, n: (0, 0)

    out = pl.pallas_call(
        kernel,
        out_shape=jax.ShapeDtypeStruct((B, D2, 1), jnp.float32),
        grid_spec=pltpu.PrefetchScalarGridSpec(
            num_scalar_prefetch=0,
            grid=(B, nt),                       # reduction (N-tile) axis last
            in_specs=[
                pl.BlockSpec((1, C_aug, tn), lambda b, n: (b, 0, n)),
                pl.BlockSpec((D1, C_aug), const),
                pl.BlockSpec((D2, D1), const),
                pl.BlockSpec((D2, 1), const),
            ],
            out_specs=pl.BlockSpec((1, D2, 1), lambda b, n: (b, 0, 0)),
            scratch_shapes=[pltpu.VMEM((D2, acc_lanes), jnp.float32)],
        ),
        compiler_params=pltpu.CompilerParams(
            dimension_semantics=("parallel", "arbitrary")),
    )(x, w1a, w2, c2)
    # TODO(synk): on v7x with tiny B, split the N-tile axis across the two
    # TensorCores (per-core accumulator slab + jnp.maximum combine in the
    # wrapper) instead of relying on the B-parallel axis alone.
    return out


def make_raw_params(key, c_in, output_dims):
    """Torch-shaped GSAConv params: per layer Conv1d(prev, d, 1) + BatchNorm1d(d)
    with (mildly randomized) running stats so the BN fold is actually tested."""
    layers = []
    prev = c_in
    for d in output_dims:
        key, kw, kb, kg, kbe, km, kv = jax.random.split(key, 7)
        w = jax.random.normal(kw, (d, prev), jnp.float32) / np.sqrt(prev)
        b = jax.random.normal(kb, (d,), jnp.float32) * 0.1
        gamma = 1.0 + 0.1 * jax.random.normal(kg, (d,), jnp.float32)
        beta = 0.1 * jax.random.normal(kbe, (d,), jnp.float32)
        mean = 0.1 * jax.random.normal(km, (d,), jnp.float32)
        var = 1.0 + 0.5 * jax.random.uniform(kv, (d,), jnp.float32)
        layers.append((w, b, gamma, beta, mean, var))
        prev = d
    return layers


def fold_params(layers, eps=1e-5):
    """Fold eval-mode BN into conv weight/bias.  Layer-1 bias is appended as an
    extra weight column (pairs with the ones activation row); weights -> bf16,
    layer-2 bias -> f32 (D2, 1) column."""
    # TODO(synk): generalize kernel + fold to >2 MLP layers (loop in-kernel).
    assert len(layers) == 2, "kernel implements the 2-layer GSAConv MLP"
    (w1, b1, g1, be1, m1, v1), (w2, b2, g2, be2, m2, v2) = layers
    s1 = g1 / jnp.sqrt(v1 + eps)
    t1 = be1 - m1 * s1
    c1 = b1 * s1 + t1
    w1a = jnp.concatenate([w1 * s1[:, None], c1[:, None]],
                          axis=1).astype(jnp.bfloat16)          # (D1, C_in+1)
    s2 = g2 / jnp.sqrt(v2 + eps)
    t2 = be2 - m2 * s2
    w2s = (w2 * s2[:, None]).astype(jnp.bfloat16)               # (D2, D1)
    c2 = (b2 * s2 + t2)[:, None].astype(jnp.float32)            # (D2, 1)
    return (w1a, w2s, c2)


def _reference_folded(points, feats, fused):
    """Pure-JAX reference using the same folded bf16 weights the kernel uses."""
    w1a, w2, c2 = fused
    B, _, N = points.shape
    xb = jnp.concatenate([points.astype(jnp.bfloat16),
                          feats.astype(jnp.bfloat16),
                          jnp.ones((B, 1, N), jnp.bfloat16)], axis=1)
    h = jnp.einsum('dc,bcn->bdn', w1a, xb, preferred_element_type=jnp.float32)
    h = jnp.maximum(h, 0.0).astype(jnp.bfloat16)
    h = jnp.einsum('ed,bdn->ben', w2, h, preferred_element_type=jnp.float32) + c2[None]
    h = jnp.maximum(h, 0.0)
    return jnp.max(h, axis=-1, keepdims=True)                    # (B, D2, 1)


def _reference_raw(points, feats, layers, eps=1e-5):
    """Unfused f32 reference of GlobalAbstractionModule.forward (eval-mode BN)."""
    h = jnp.concatenate([points, feats], axis=1)                 # (B, C_in, N)
    for (w, b, g, be, m, v) in layers:
        h = jnp.einsum('oc,bcn->bon', w, h) + b[:, None]
        h = (h - m[:, None]) * (g[:, None] / jnp.sqrt(v[:, None] + eps)) + be[:, None]
        h = jnp.maximum(h, 0.0)
    return jnp.max(h, axis=-1, keepdims=True)                    # (B, D_out, 1)


if __name__ == "__main__":
    OUTPUT_DIMS = (32, 64)
    C_FEAT = 4
    C_IN = 3 + C_FEAT

    key = jax.random.PRNGKey(0)
    kparam, kp1, kf1, kp2, kf2 = jax.random.split(key, 5)
    layers = make_raw_params(kparam, C_IN, OUTPUT_DIMS)
    fused = fold_params(layers)

    # --- small shape: one full-extent tile per batch ------------------------
    B, N = 2, 16
    points = jax.random.normal(kp1, (B, 3, N), jnp.float32)
    feats = jax.random.normal(kf1, (B, C_FEAT, N), jnp.float32)
    out = jax.block_until_ready(global_abstraction_forward(points, feats, fused))
    assert out.shape == (B, OUTPUT_DIMS[-1], 1), out.shape
    np.testing.assert_allclose(np.asarray(out),
                               np.asarray(_reference_folded(points, feats, fused)),
                               rtol=1e-3, atol=1e-3)
    np.testing.assert_allclose(np.asarray(out),
                               np.asarray(_reference_raw(points, feats, layers)),
                               rtol=5e-2, atol=5e-2)

    # --- multi-tile + ragged tail: exercises N tiling, lane-wide accumulator
    # and the last-tile-only -inf pad mask ------------------------------------
    B2, N2 = 2, 272          # 3 tiles of 128; last tile partially out of bounds
    points2 = jax.random.normal(kp2, (B2, 3, N2), jnp.float32)
    feats2 = jax.random.normal(kf2, (B2, C_FEAT, N2), jnp.float32)
    out2 = jax.block_until_ready(
        global_abstraction_forward(points2, feats2, fused, tn_max=128))
    np.testing.assert_allclose(np.asarray(out2),
                               np.asarray(_reference_folded(points2, feats2, fused)),
                               rtol=1e-3, atol=1e-3)

    # --- same data, default tn_max: single full-extent (non-128-multiple) tile
    out3 = jax.block_until_ready(
        global_abstraction_forward(points2, feats2, fused))
    np.testing.assert_allclose(np.asarray(out3), np.asarray(out2),
                               rtol=1e-3, atol=1e-3)

    print("KERNEL_OK")
</pallas_src>

<mosaic_0001>
module attributes {stable_mosaic.version = 11 : i64} {
  func.func @_gsa_kernel(%arg0: i32, %arg1: i32, %arg2: memref<1x8x16xbf16, #tpu.memory_space<vmem>>, %arg3: memref<32x8xbf16, #tpu.memory_space<vmem>>, %arg4: memref<64x32xbf16, #tpu.memory_space<vmem>>, %arg5: memref<64x1xf32, #tpu.memory_space<vmem>>, %arg6: memref<1x64x1xf32, #tpu.memory_space<vmem>>, %arg7: memref<64x1xf32, #tpu.memory_space<vmem>>) attributes {dimension_semantics = [#tpu.dimension_semantics<parallel>, #tpu.dimension_semantics<arbitrary>], iteration_bounds = array<i64: 2, 1>, scalar_prefetch = 0 : i64, scratch_operands = 1 : i64, tpu.core_type = #tpu.core_type<tc>, window_params = [{transform_indices = @transform_0, window_bounds = array<i64: 1, 8, 16>}, {pipeline_mode = #tpu.pipeline_mode<synchronous>, transform_indices = @transform_1, window_bounds = array<i64: 32, 8>}, {pipeline_mode = #tpu.pipeline_mode<synchronous>, transform_indices = @transform_2, window_bounds = array<i64: 64, 32>}, {pipeline_mode = #tpu.pipeline_mode<synchronous>, transform_indices = @transform_3, window_bounds = array<i64: 64, 1>}, {transform_indices = @transform_4, window_bounds = array<i64: 1, 64, 1>}]} {
    %c0_i32 = arith.constant 0 : i32
    %0 = arith.cmpi eq, %arg1, %c0_i32 : i32
    %1 = arith.extui %0 : i1 to i32
    %c0_i32_0 = arith.constant 0 : i32
    %2 = arith.cmpi ne, %1, %c0_i32_0 : i32
    scf.if %2 {
      %cst_19 = arith.constant 0xFF800000 : f32
      %25 = vector.broadcast %cst_19 : f32 to vector<64x1xf32>
      %c0_20 = arith.constant 0 : index
      %c0_21 = arith.constant 0 : index
      %26 = vector.load %arg7[%c0_20, %c0_21] : memref<64x1xf32, #tpu.memory_space<vmem>>, vector<64x1xf32>
      tpu.vector_store %arg7[%c0_20, %c0_21], %25 {strides = array<i32>} : memref<64x1xf32, #tpu.memory_space<vmem>>, vector<64x1xf32>,
    } else {
    }
    %c0 = arith.constant 0 : index
    %c0_1 = arith.constant 0 : index
    %3 = vector.load %arg3[%c0, %c0_1] : memref<32x8xbf16, #tpu.memory_space<vmem>>, vector<32x8xbf16>
    %c0_2 = arith.constant 0 : index
    %c0_3 = arith.constant 0 : index
    %c0_4 = arith.constant 0 : index
    %4 = vector.load %arg2[%c0_2, %c0_3, %c0_4] : memref<1x8x16xbf16, #tpu.memory_space<vmem>>, vector<1x8x16xbf16>
    %5 = vector.shape_cast %4 : vector<1x8x16xbf16> to vector<8x16xbf16>
    %cst = arith.constant dense<0.000000e+00> : vector<32x16xf32>
    %6 = tpu.matmul %3, %5, %cst {dimension_numbers = #tpu.dot_dimension_numbers<[1], [0], [0], [1], [0, 0, 1, 1], [], []>} : vector<32x8xbf16>, vector<8x16xbf16>, vector<32x16xf32> -> vector<32x16xf32>
    %cst_5 = arith.constant 0.000000e+00 : f32
    %7 = vector.broadcast %cst_5 : f32 to vector<32x16xf32>
    %8 = arith.maximumf %6, %7 : vector<32x16xf32>
    %9 = arith.truncf %8 : vector<32x16xf32> to vector<32x16xbf16>
    %c0_6 = arith.constant 0 : index
    %c0_7 = arith.constant 0 : index
    %10 = vector.load %arg4[%c0_6, %c0_7] : memref<64x32xbf16, #tpu.memory_space<vmem>>, vector<64x32xbf16>
    %cst_8 = arith.constant dense<0.000000e+00> : vector<64x16xf32>
    %11 = tpu.matmul %10, %9, %cst_8 {dimension_numbers = #tpu.dot_dimension_numbers<[1], [0], [0], [1], [0, 0, 1, 1], [], []>} : vector<64x32xbf16>, vector<32x16xbf16>, vector<64x16xf32> -> vector<64x16xf32>
    %c0_9 = arith.constant 0 : index
    %c0_10 = arith.constant 0 : index
    %12 = vector.load %arg5[%c0_9, %c0_10] : memref<64x1xf32, #tpu.memory_space<vmem>>, vector<64x1xf32>
    %13 = vector.broadcast %12 : vector<64x1xf32> to vector<64x16xf32>
    %14 = arith.addf %11, %13 : vector<64x16xf32>
    %cst_11 = arith.constant 0.000000e+00 : f32
    %15 = vector.broadcast %cst_11 : f32 to vector<64x16xf32>
    %16 = arith.maximumf %14, %15 : vector<64x16xf32>
    %cst_12 = arith.constant dense<0xFF800000> : vector<64xf32>
    %17 = vector.multi_reduction <maximumf>, %16, %cst_12 [1] : vector<64x16xf32> to vector<64xf32>
    %18 = vector.shape_cast %17 : vector<64xf32> to vector<64x1xf32>
    %c0_13 = arith.constant 0 : index
    %c0_14 = arith.constant 0 : index
    %19 = vector.load %arg7[%c0_13, %c0_14] : memref<64x1xf32, #tpu.memory_space<vmem>>, vector<64x1xf32>
    %20 = arith.maximumf %19, %18 : vector<64x1xf32>
    %c0_15 = arith.constant 0 : index
    %c0_16 = arith.constant 0 : index
    %21 = vector.load %arg7[%c0_15, %c0_16] : memref<64x1xf32, #tpu.memory_space<vmem>>, vector<64x1xf32>
    tpu.vector_store %arg7[%c0_15, %c0_16], %20 {strides = array<i32>} : memref<64x1xf32, #tpu.memory_space<vmem>>, vector<64x1xf32>,
    %c0_i32_17 = arith.constant 0 : i32
    %22 = arith.cmpi eq, %arg1, %c0_i32_17 : i32
    %23 = arith.extui %22 : i1 to i32
    %c0_i32_18 = arith.constant 0 : i32
    %24 = arith.cmpi ne, %23, %c0_i32_18 : i32
    scf.if %24 {
      %c0_19 = arith.constant 0 : index
      %c0_20 = arith.constant 0 : index
      %25 = vector.load %arg7[%c0_19, %c0_20] : memref<64x1xf32, #tpu.memory_space<vmem>>, vector<64x1xf32>
      %cst_21 = arith.constant dense<0xFF800000> : vector<64xf32>
      %26 = vector.multi_reduction <maximumf>, %25, %cst_21 [1] : vector<64x1xf32> to vector<64xf32>
      %27 = vector.shape_cast %26 : vector<64xf32> to vector<64x1xf32>
      %c0_22 = arith.constant 0 : index
      %c0_23 = arith.constant 0 : index
      %c0_24 = arith.constant 0 : index
      %28 = vector.load %arg6[%c0_22, %c0_23, %c0_24] : memref<1x64x1xf32, #tpu.memory_space<vmem>>, vector<1x64x1xf32>
      %29 = vector.shape_cast %28 : vector<1x64x1xf32> to vector<64x1xf32>
      %30 = vector.shape_cast %27 : vector<64x1xf32> to vector<1x64x1xf32>
      tpu.vector_store %arg6[%c0_22, %c0_23, %c0_24], %30 {strides = array<i32>} : memref<1x64x1xf32, #tpu.memory_space<vmem>>, vector<1x64x1xf32>,
    } else {
    }
    return
  }
  func.func @transform_0(%arg0: i32, %arg1: i32) -> (i32, i32, i32) {
    %c0_i32 = arith.constant 0 : i32
    %c0_i32_0 = arith.constant 0 : i32
    return %arg0, %c0_i32, %arg1 : i32, i32, i32
  }
  func.func @transform_1(%arg0: i32, %arg1: i32) -> (i32, i32) {
    %c0_i32 = arith.constant 0 : i32
    %c0_i32_0 = arith.constant 0 : i32
    %c0_i32_1 = arith.constant 0 : i32
    return %c0_i32, %c0_i32_0 : i32, i32
  }
  func.func @transform_2(%arg0: i32, %arg1: i32) -> (i32, i32) {
    %c0_i32 = arith.constant 0 : i32
    %c0_i32_0 = arith.constant 0 : i32
    %c0_i32_1 = arith.constant 0 : i32
    return %c0_i32, %c0_i32_0 : i32, i32
  }
  func.func @transform_3(%arg0: i32, %arg1: i32) -> (i32, i32) {
    %c0_i32 = arith.constant 0 : i32
    %c0_i32_0 = arith.constant 0 : i32
    %c0_i32_1 = arith.constant 0 : i32
    return %c0_i32, %c0_i32_0 : i32, i32
  }
  func.func @transform_4(%arg0: i32, %arg1: i32) -> (i32, i32, i32) {
    %c0_i32 = arith.constant 0 : i32
    %c0_i32_0 = arith.constant 0 : i32
    %c0_i32_1 = arith.constant 0 : i32
    return %arg0, %c0_i32, %c0_i32_0 : i32, i32, i32
  }
}

</mosaic_0001>

<llo_original>
// kernel: tpu_custom_call.1
$region0: #{tpu_custom_call.1}
  #allocation0 [shape = 'u32[]', space=smem, size = 0x4, offset = 0x4, fixed_abs, tag = 'smem constant byte address 0x4 - core index']
  #allocation1 [shape = 'u32[144,128]{1,0:T(1,128)}', space=vmem, size = 0x12000, scoped, tag = 'internal scratch']
  #allocation2 [shape = 'f32[64,1]{1,0:T(8,128)}', space=vmem, size = 0x8000, scoped, tag = 'scratch operand']
  %s0 = inlined_call_operand.vmem [shape: bf16[2,8,16], index: 0, kind: input, shape index: {}]
  %s1 = inlined_call_operand.vmem [shape: bf16[32,8], index: 1, kind: input, shape index: {}]
  %s2 = inlined_call_operand.vmem [shape: bf16[64,32], index: 2, kind: input, shape index: {}]
  %s3 = inlined_call_operand.vmem [shape: f32[64,1], index: 3, kind: input, shape index: {}]
  %s4 = inlined_call_operand.vmem [shape: f32[2,64,1], index: 4, kind: output, shape index: {}]
  %s5 = sld [smem:[#allocation0]]
  $region57: #{tpu_custom_call.1} parent=0
    _
  %s7 = ssub.s32 1, %s5
  %s8 = scalar_select 0, %s7, %s5
  loop: start=0, step=1, limit=4
  $region2: #{tpu_custom_call.1} parent=0 // loop_pre_header
    _
  $region3: #{tpu_custom_call.1} parent=0 // loop_header
    %s10 = sphi 0, %s14
    %p11 = scmp.ge.s32.totalorder %s10, 4
    %s17 = sphi 0, %s29
    %s18 = sphi 0, %s25
    %s19 = sphi 0, %s17
    %s20 = sphi 0, %s18
    %s21 = sphi 0, %s19
    %s22 = sphi 0, %s20
    %s34 = sphi 0, %s36
    %s37 = sphi 0, %s34
    %s38 = sphi 0, %s37
    %s54 = sphi 0, %s38
    %s58 = sphi 0, %s58
    %s60 = sphi 0, %s58
    %s61 = sphi 0, %s60
    %s75 = sphi 0, %s61
    %s79 = sphi 0, %s79
    %s81 = sphi 0, %s79
    %s82 = sphi 0, %s81
    %s96 = sphi 0, %s82
    %s100 = sphi 0, %s100
    %s102 = sphi 0, %s100
    %s103 = sphi 0, %s102
    %s117 = sphi 0, %s103
    %s123 = sphi 0, %s125
    %s126 = sphi 0, %s123
    %s127 = sphi 0, %s126
    %s143 = sphi 0, %s127
  $region4: #{tpu_custom_call.1} parent=0 // loop_header_branch
    %13 = sbr.rel (%p11) target = $region8
  $region5: #{tpu_custom_call.1} parent=0 // loop_body
    %s15 = ssub.s32 %s10, 1
    %s16 = ssub.s32 %s10, 2
    %s23 = sadd.s32 1, %s18
    %p24 = scmp.ge.s32.totalorder %s23, 1
    %s25 = scalar_select %p24, 0, %s23
    %s26 = sadd.s32 1, %s17
    %s27 = scalar_select %p24, %s26, %s17
    %p28 = scmp.ge.s32.totalorder %s27, 2
    %s29 = scalar_select %p28, 0, %s27
    %s30 = ssub.s32 %s17, %s29
    %s31 = ssub.s32 %s18, %s25
    %s32 = sor.u32 %s30, %s31
    %p33 = scmp.eq.s32.totalorder %s32, 0
    %s35 = sadd.s32 %s34, 1
    %s36 = scalar_select %p33, %s34, %s35
    %p39 = pneg %p33
    %p40 = scmp.eq.s32.totalorder %s10, 1
    %p41 = por %p39, %p40
    %p42 = scmp.ne.s32.totalorder %s34, %s37
    %p43 = scmp.eq.s32.totalorder %s10, 0
    %p44 = por %p42, %p43
    %p45 = scmp.ne.s32.totalorder %s34, %s37
    %p46 = scmp.eq.s32.totalorder %s15, 1
    %p47 = por %p45, %p46
    %p48 = scmp.ne.s32.totalorder %s37, %s38
    %p49 = scmp.eq.s32.totalorder %s15, 0
    %p50 = por %p48, %p49
    %p51 = scmp.ne.s32.totalorder %s37, %s38
    %p52 = scmp.eq.s32.totalorder %s16, 1
    %p53 = por %p51, %p52
    %p55 = scmp.ne.s32.totalorder %s38, %s54
    %p56 = scmp.eq.s32.totalorder %s16, 0
    %p57 = por %p55, %p56
    %s59 = sadd.s32 %s58, 1
    %p62 = scmp.eq.s32.totalorder %s10, 1
    %p63 = scmp.ne.s32.totalorder %s58, %s60
    %p64 = scmp.eq.s32.totalorder %s10, 0
    %p65 = por %p63, %p64
    %p66 = scmp.ne.s32.totalorder %s58, %s60
    %p67 = scmp.eq.s32.totalorder %s15, 1
    %p68 = por %p66, %p67
    %p69 = scmp.ne.s32.totalorder %s60, %s61
    %p70 = scmp.eq.s32.totalorder %s15, 0
    %p71 = por %p69, %p70
    %p72 = scmp.ne.s32.totalorder %s60, %s61
    %p73 = scmp.eq.s32.totalorder %s16, 1
    %p74 = por %p72, %p73
    %p76 = scmp.ne.s32.totalorder %s61, %s75
    %p77 = scmp.eq.s32.totalorder %s16, 0
    %p78 = por %p76, %p77
    %s80 = sadd.s32 %s79, 1
    %p83 = scmp.eq.s32.totalorder %s10, 1
    %p84 = scmp.ne.s32.totalorder %s79, %s81
    %p85 = scmp.eq.s32.totalorder %s10, 0
    %p86 = por %p84, %p85
    %p87 = scmp.ne.s32.totalorder %s79, %s81
    %p88 = scmp.eq.s32.totalorder %s15, 1
    %p89 = por %p87, %p88
    %p90 = scmp.ne.s32.totalorder %s81, %s82
    %p91 = scmp.eq.s32.totalorder %s15, 0
    %p92 = por %p90, %p91
    %p93 = scmp.ne.s32.totalorder %s81, %s82
    %p94 = scmp.eq.s32.totalorder %s16, 1
    %p95 = por %p93, %p94
    %p97 = scmp.ne.s32.totalorder %s82, %s96
    %p98 = scmp.eq.s32.totalorder %s16, 0
    %p99 = por %p97, %p98
    %s101 = sadd.s32 %s100, 1
    %p104 = scmp.eq.s32.totalorder %s10, 1
    %p105 = scmp.ne.s32.totalorder %s100, %s102
    %p106 = scmp.eq.s32.totalorder %s10, 0
    %p107 = por %p105, %p106
    %p108 = scmp.ne.s32.totalorder %s100, %s102
    %p109 = scmp.eq.s32.totalorder %s15, 1
    %p110 = por %p108, %p109
    %p111 = scmp.ne.s32.totalorder %s102, %s103
    %p112 = scmp.eq.s32.totalorder %s15, 0
    %p113 = por %p111, %p112
    %p114 = scmp.ne.s32.totalorder %s102, %s103
    %p115 = scmp.eq.s32.totalorder %s16, 1
    %p116 = por %p114, %p115
    %p118 = scmp.ne.s32.totalorder %s103, %s117
    %p119 = scmp.eq.s32.totalorder %s16, 0
    %p120 = por %p118, %p119
    %s121 = ssub.s32 %s17, %s29
    %p122 = scmp.eq.s32.totalorder %s121, 0
    %s124 = sadd.s32 %s123, 1
    %s125 = scalar_select %p122, %s123, %s124
    %p128 = pneg %p122
    %p129 = scmp.eq.s32.totalorder %s10, 1
    %p130 = por %p128, %p129
    %p131 = scmp.ne.s32.totalorder %s123, %s126
    %p132 = scmp.eq.s32.totalorder %s10, 0
    %p133 = por %p131, %p132
    %p134 = scmp.ne.s32.totalorder %s123, %s126
    %p135 = scmp.eq.s32.totalorder %s15, 1
    %p136 = por %p134, %p135
    %p137 = scmp.ne.s32.totalorder %s126, %s127
    %p138 = scmp.eq.s32.totalorder %s15, 0
    %p139 = por %p137, %p138
    %p140 = scmp.ne.s32.totalorder %s126, %s127
    %p141 = scmp.eq.s32.totalorder %s16, 1
    %p142 = por %p140, %p141
    %p144 = scmp.ne.s32.totalorder %s127, %s143
    %p145 = scmp.eq.s32.totalorder %s16, 0
    %p146 = por %p144, %p145
    %p147 = scmp.le.s32.totalorder 1, %s10
    %p148 = scmp.lt.s32.totalorder %s10, 3
    %p149 = pnand %p147, %p148
    %p150 = pneg %p149
    // Predicated region
    $region9: #{tpu_custom_call.1} parent=5 // pred_check
      _
    $region10: #{tpu_custom_call.1} parent=5 // pred_check_branch
      %152 = sbr.rel (%p149) target = $region12
    $region11: #{tpu_custom_call.1} parent=5 // pred_region
      %s153 = ssub.s32 %s10, 1
      // Predicated region
      $region13: #{tpu_custom_call.1} parent=11 // pred_check
        %p154 = pneg %p71
      $region14: #{tpu_custom_call.1} parent=11 // pred_check_branch
        %156 = sbr.rel (%p154) target = $region16
      $region15: #{tpu_custom_call.1} parent=11 // pred_region
        _
      $region16: #{tpu_custom_call.1} parent=11 // pred_fallthru
        _
      // Predicated region
      $region17: #{tpu_custom_call.1} parent=11 // pred_check
        %p157 = pneg %p92
      $region18: #{tpu_custom_call.1} parent=11 // pred_check_branch
        %159 = sbr.rel (%p157) target = $region20
      $region19: #{tpu_custom_call.1} parent=11 // pred_region
        _
      $region20: #{tpu_custom_call.1} parent=11 // pred_fallthru
        _
      // Predicated region
      $region21: #{tpu_custom_call.1} parent=11 // pred_check
        %p160 = pneg %p113
      $region22: #{tpu_custom_call.1} parent=11 // pred_check_branch
        %162 = sbr.rel (%p160) target = $region24
      $region23: #{tpu_custom_call.1} parent=11 // pred_region
        _
      $region24: #{tpu_custom_call.1} parent=11 // pred_fallthru
        _
    $region12: #{tpu_custom_call.1} parent=5 // pred_fallthru
      _
    %p163 = scmp.lt.s32.totalorder %s10, 2
    // Predicated region
    $region25: #{tpu_custom_call.1} parent=5 // pred_check
      %p164 = pneg %p163
    $region26: #{tpu_custom_call.1} parent=5 // pred_check_branch
      %166 = sbr.rel (%p164) target = $region28
    $region27: #{tpu_custom_call.1} parent=5 // pred_region
      // Predicated region
      $region29: #{tpu_custom_call.1} parent=27 // pred_check
        %p167 = pneg %p44
      $region30: #{tpu_custom_call.1} parent=27 // pred_check_branch
        %169 = sbr.rel (%p167) target = $region32
      $region31: #{tpu_custom_call.1} parent=27 // pred_region
        %p170 = scmp.lt.s32.totalorder %s17, 1
        %s171 = scalar_select %p170, %s17, 1
        %p172 = scmp.lt.s32.totalorder %s18, 0
        %s173 = scalar_select %p172, %s18, 0
        %s174 = sadd.s32 %s173, %s171
        %s175 = smul.addr %s174, 4
        %s176 = scalar_lea.vmem %s0, %s175
      $region32: #{tpu_custom_call.1} parent=27 // pred_fallthru
        _
    $region28: #{tpu_custom_call.1} parent=5 // pred_fallthru
      _
    %p177 = scmp.le.s32.totalorder 1, %s10
    %p178 = scmp.lt.s32.totalorder %s10, 3
    %p179 = pnand %p177, %p178
    %p180 = pneg %p179
    // Predicated region
    $region33: #{tpu_custom_call.1} parent=5 // pred_check
      _
    $region34: #{tpu_custom_call.1} parent=5 // pred_check_branch
      %182 = sbr.rel (%p179) target = $region36
    $region35: #{tpu_custom_call.1} parent=5 // pred_region
      %s183 = ssub.s32 %s10, 1
      %p184 = scmp.lt.s32.totalorder %s19, 1
      %s185 = scalar_select %p184, %s19, 1
      %p186 = scmp.lt.s32.totalorder %s20, 0
      %s187 = scalar_select %p186, %s20, 0
      %s188 = sadd.s32 %s187, %s185
      %s189 = smul.addr %s188, 4
      %s190 = scalar_lea.vmem %s0, %s189
      %p191 = pneg %p50
      %p192 = pneg %p47
      %p193 = pneg %p71
      %p194 = pneg %p68
      %p195 = pneg %p92
      %p196 = pneg %p89
      %p197 = pneg %p113
      %p198 = pneg %p110
      %p199 = pneg %p139
      %p200 = pneg %p136
      %p201 = scmp.lt.s32.totalorder %s19, 1
      %s202 = scalar_select %p201, %s19, 1
      %s203 = smul.addr %s202, 8
      %s204 = smul.addr %s203, 8
      %s205 = scalar_lea.vmem %s4, %s204
      %p206 = scmp.lt.s32.totalorder %s19, 1
      %s207 = scalar_select %p206, %s19, 1
      %p208 = scmp.lt.s32.totalorder %s20, 0
      %s209 = scalar_select %p208, %s20, 0
      %s210 = sadd.s32 %s209, %s207
      %s211 = smul.addr %s210, 4
      %s212 = scalar_lea.vmem %s0, %s211
      %p213 = scmp.lt.s32.totalorder %s19, 1
      %s214 = scalar_select %p213, %s19, 1
      %s215 = smul.addr %s214, 8
      %s216 = smul.addr %s215, 8
      %s217 = scalar_lea.vmem %s4, %s216
      %p219 = scmp.eq.s32.totalorder %s20, 0
      // Predicated region
      $region37: #{tpu_custom_call.1} parent=35 // pred_check
        %p220 = pneg %p219
      $region38: #{tpu_custom_call.1} parent=35 // pred_check_branch
        %222 = sbr.rel (%p220) target = $region40
      $region39: #{tpu_custom_call.1} parent=35 // pred_region
        %vm223 = vcmask 7168
        %224 = vst.msk [vmem:[#allocation2] sm:$0xff] %vm223, -inf
        %225 = vst.msk [vmem:[#allocation2 + $0x8] sm:$0xff] %vm223, -inf
        %226 = vst.msk [vmem:[#allocation2 + $0x10] sm:$0xff] %vm223, -inf
        %227 = vst.msk [vmem:[#allocation2 + $0x18] sm:$0xff] %vm223, -inf
        %228 = vst.msk [vmem:[#allocation2 + $0x20] sm:$0xff] %vm223, -inf
        %229 = vst.msk [vmem:[#allocation2 + $0x28] sm:$0xff] %vm223, -inf
        %230 = vst.msk [vmem:[#allocation2 + $0x30] sm:$0xff] %vm223, -inf
        %231 = vst.msk [vmem:[#allocation2 + $0x38] sm:$0xff] %vm223, -inf
      $region40: #{tpu_custom_call.1} parent=35 // pred_fallthru
        _
      %v232 = vld [vmem:[%s1] sm:$0xf]
      %v233 = vld [vmem:[%s1 + $0x4] sm:$0xf]
      %v234 = vld [vmem:[%s1 + $0x8] sm:$0xf]
      %v235 = vld [vmem:[%s1 + $0xc] sm:$0xf]
      %v236 = vld [vmem:[%s212] sm:$0xf]
      %v241 = vunpack.c.l.b16 %v232
      %v242 = vunpack.c.l.b16 %v233
      %v243 = vunpack.c.l.b16 %v234
      %v244 = vunpack.c.l.b16 %v235
      %v245 = vpack.c.b16 %v242, %v241
      %v246 = vpack.c.b16 %v244, %v243
      %vm247 = vcmask 64512
      %v249 = vsel %vm247, %v245, 0
      %v252 = vsel %vm247, %v246, 0
      %vm254 = vcmask 1043456
      %v256 = vsel %vm254, %v236, 0
      %258 = vmatprep.subr.bf16.mxu0 0
      %259 = vmatpush1.bf16.msra.mxu0 %v256
      %260 = vmatprep.subr.bf16.mxu0 0
      %261 = vmatpush1.bf16.msra.mxu0 0
      %262 = vmatprep.subr.bf16.mxu0 0
      %263 = vmatpush1.bf16.msra.mxu0 0
      %264 = vmatprep.subr.bf16.mxu0 0
      %265 = vmatpush1.bf16.msra.mxu0 0
      %266 = vmatprep.subr.bf16.mxu0 0
      %267 = vmatpush1.bf16.msra.mxu0 0
      %268 = vmatprep.subr.bf16.mxu0 0
      %269 = vmatpush1.bf16.msra.mxu0 0
      %270 = vmatprep.subr.bf16.mxu0 0
      %271 = vmatpush1.bf16.msra.mxu0 0
      %272 = vmatprep.subr.bf16.mxu0 0
      %273 = vmatpush1.bf16.msra.mxu0 0
      %274 = vmatprep.subr.bf16.mxu0 0
      %275 = vmatpush1.bf16.msra.mxu0 0
      %276 = vmatprep.subr.bf16.mxu0 0
      %277 = vmatpush1.bf16.msra.mxu0 0
      %278 = vmatprep.subr.bf16.mxu0 0
      %279 = vmatpush1.bf16.msra.mxu0 0
      %280 = vmatprep.subr.bf16.mxu0 0
      %281 = vmatpush1.bf16.msra.mxu0 0
      %282 = vmatprep.subr.bf16.mxu0 0
      %283 = vmatpush1.bf16.msra.mxu0 0
      %284 = vmatprep.subr.bf16.mxu0 0
      %285 = vmatpush1.bf16.msra.mxu0 0
      %286 = vmatprep.subr.bf16.mxu0 0
      %287 = vmatpush1.bf16.msra.mxu0 0
      %288 = vmatprep.subr.bf16.mxu0 0
      %289 = vmatpush1.bf16.msra.mxu0 0
      %290 = vmatprep.mubr.bf16.mxu0 0
      %291 = vmatmul.mubr.bf16.gmra.mrb[0].mxu0 %v249
      %v292 = vpop.f32.mrb[0].mxu0
      %v293 = vadd.f32 0.0, %v292
      %v294 = vpop.f32.mrb[0].mxu0
      %v295 = vpop.f32.mrb[0].mxu0
      %v296 = vadd.f32 0.0, %v295
      %v297 = vpop.f32.mrb[0].mxu0
      %298 = vmatprep.mubr.bf16.mxu0 0
      %299 = vmatmul.mubr.bf16.gmra.mrb[0].mxu0 %v252
      %v300 = vpop.f32.mrb[0].mxu0
      %v301 = vadd.f32 0.0, %v300
      %v302 = vpop.f32.mrb[0].mxu0
      %v303 = vpop.f32.mrb[0].mxu0
      %v304 = vadd.f32 0.0, %v303
      %v305 = vpop.f32.mrb[0].mxu0
      %306 = vdwg.mxu0
      %v307 = vmax.f32 %v293, 0.0
      %v308 = vmax.f32 %v296, 0.0
      %v309 = vmax.f32 %v301, 0.0
      %v310 = vmax.f32 %v304, 0.0
      %v311 = vpack.c.bf16 %v308, %v307
      %v312 = vpack.c.bf16 %v310, %v309
      %v313 = vld [vmem:[%s2] sm:$0xf]
      %v314 = vld [vmem:[%s2 + $0x4] sm:$0xf]
      %v315 = vld [vmem:[%s2 + $0x8] sm:$0xf]
      %v316 = vld [vmem:[%s2 + $0xc] sm:$0xf]
      %v317 = vld [vmem:[%s2 + $0x10] sm:$0xf]
      %v318 = vld [vmem:[%s2 + $0x14] sm:$0xf]
      %v319 = vld [vmem:[%s2 + $0x18] sm:$0xf]
      %v320 = vld [vmem:[%s2 + $0x1c] sm:$0xf]
      %v321 = vld [vmem:[%s3] sm:$0xff]
      %v322 = vld [vmem:[%s3 + $0x8] sm:$0xff]
      %v323 = vld [vmem:[%s3 + $0x10] sm:$0xff]
      %v324 = vld [vmem:[%s3 + $0x18] sm:$0xff]
      %v325 = vld [vmem:[%s3 + $0x20] sm:$0xff]
      %v326 = vld [vmem:[%s3 + $0x28] sm:$0xff]
      %v327 = vld [vmem:[%s3 + $0x30] sm:$0xff]
      %v328 = vld [vmem:[%s3 + $0x38] sm:$0xff]
      %330 = vset.pattern.permute.xlu0 0
      %331 = vperm.xlu0 %330, %v321
      %v332 = vpop.permute.xlu0 %331
      %335 = vset.pattern.permute.xlu0 0
      %336 = vperm.xlu0 %335, %v322
      %v337 = vpop.permute.xlu0 %336
      %340 = vset.pattern.permute.xlu0 0
      %341 = vperm.xlu0 %340, %v323
      %v342 = vpop.permute.xlu0 %341
      %345 = vset.pattern.permute.xlu0 0
      %346 = vperm.xlu0 %345, %v324
      %v347 = vpop.permute.xlu0 %346
      %350 = vset.pattern.permute.xlu0 0
      %351 = vperm.xlu0 %350, %v325
      %v352 = vpop.permute.xlu0 %351
      %355 = vset.pattern.permute.xlu0 0
      %356 = vperm.xlu0 %355, %v326
      %v357 = vpop.permute.xlu0 %356
      %360 = vset.pattern.permute.xlu0 0
      %361 = vperm.xlu0 %360, %v327
      %v362 = vpop.permute.xlu0 %361
      %365 = vset.pattern.permute.xlu0 0
      %366 = vperm.xlu0 %365, %v328
      %v367 = vpop.permute.xlu0 %366
      %v377 = vunpack.c.l.b16 %v313
      %v378 = vunpack.c.l.b16 %v314
      %v379 = vunpack.c.l.b16 %v315
      %v380 = vunpack.c.l.b16 %v316
      %v381 = vunpack.c.l.b16 %v317
      %v382 = vunpack.c.l.b16 %v318
      %v383 = vunpack.c.l.b16 %v319
      %v384 = vunpack.c.l.b16 %v320
      %v385 = vpack.c.b16 %v378, %v377
      %v386 = vpack.c.b16 %v380, %v379
      %v387 = vpack.c.b16 %v382, %v381
      %v388 = vpack.c.b16 %v384, %v383
      %vm389 = vcmask 261120
      %v391 = vsel %vm389, %v385, 0
      %v394 = vsel %vm389, %v386, 0
      %v397 = vsel %vm389, %v387, 0
      %v400 = vsel %vm389, %v388, 0
      %402 = vmatprep.subr.bf16.mxu0 0
      %403 = vmatpush1.bf16.msra.mxu0 %v311
      %404 = vmatprep.subr.bf16.mxu0 0
      %405 = vmatpush1.bf16.msra.mxu0 %v312
      %406 = vmatprep.subr.bf16.mxu0 0
      %407 = vmatpush1.bf16.msra.mxu0 0
      %408 = vmatprep.subr.bf16.mxu0 0
      %409 = vmatpush1.bf16.msra.mxu0 0
      %410 = vmatprep.subr.bf16.mxu0 0
      %411 = vmatpush1.bf16.msra.mxu0 0
      %412 = vmatprep.subr.bf16.mxu0 0
      %413 = vmatpush1.bf16.msra.mxu0 0
      %414 = vmatprep.subr.bf16.mxu0 0
      %415 = vmatpush1.bf16.msra.mxu0 0
      %416 = vmatprep.subr.bf16.mxu0 0
      %417 = vmatpush1.bf16.msra.mxu0 0
      %418 = vmatprep.subr.bf16.mxu0 0
      %419 = vmatpush1.bf16.msra.mxu0 0
      %420 = vmatprep.subr.bf16.mxu0 0
      %421 = vmatpush1.bf16.msra.mxu0 0
      %422 = vmatprep.subr.bf16.mxu0 0
      %423 = vmatpush1.bf16.msra.mxu0 0
      %424 = vmatprep.subr.bf16.mxu0 0
      %425 = vmatpush1.bf16.msra.mxu0 0
      %426 = vmatprep.subr.bf16.mxu0 0
      %427 = vmatpush1.bf16.msra.mxu0 0
      %428 = vmatprep.subr.bf16.mxu0 0
      %429 = vmatpush1.bf16.msra.mxu0 0
      %430 = vmatprep.subr.bf16.mxu0 0
      %431 = vmatpush1.bf16.msra.mxu0 0
      %432 = vmatprep.subr.bf16.mxu0 0
      %433 = vmatpush1.bf16.msra.mxu0 0
      %434 = vmatprep.mubr.bf16.mxu0 0
      %435 = vmatmul.mubr.bf16.gmra.mrb[0].mxu0 %v391
      %v436 = vpop.f32.mrb[0].mxu0
      %v437 = vadd.f32 %v332, %v436
      %v438 = vpop.f32.mrb[0].mxu0
      %v439 = vpop.f32.mrb[0].mxu0
      %v440 = vadd.f32 %v337, %v439
      %v441 = vpop.f32.mrb[0].mxu0
      %442 = vmatprep.mubr.bf16.mxu0 0
      %443 = vmatmul.mubr.bf16.gmra.mrb[0].mxu0 %v394
      %v444 = vpop.f32.mrb[0].mxu0
      %v445 = vadd.f32 %v342, %v444
      %v446 = vpop.f32.mrb[0].mxu0
      %v447 = vpop.f32.mrb[0].mxu0
      %v448 = vadd.f32 %v347, %v447
      %v449 = vpop.f32.mrb[0].mxu0
      %450 = vmatprep.mubr.bf16.mxu0 0
      %451 = vmatmul.mubr.bf16.gmra.mrb[0].mxu0 %v397
      %v452 = vpop.f32.mrb[0].mxu0
      %v453 = vadd.f32 %v352, %v452
      %v454 = vpop.f32.mrb[0].mxu0
      %v455 = vpop.f32.mrb[0].mxu0
      %v456 = vadd.f32 %v357, %v455
      %v457 = vpop.f32.mrb[0].mxu0
      %458 = vmatprep.mubr.bf16.mxu0 0
      %459 = vmatmul.mubr.bf16.gmra.mrb[0].mxu0 %v400
      %v460 = vpop.f32.mrb[0].mxu0
      %v461 = vadd.f32 %v362, %v460
      %v462 = vpop.f32.mrb[0].mxu0
      %v463 = vpop.f32.mrb[0].mxu0
      %v464 = vadd.f32 %v367, %v463
      %v465 = vpop.f32.mrb[0].mxu0
      %466 = vdwg.mxu0
      %v467 = vmax.f32 %v437, 0.0
      %v468 = vmax.f32 %v440, 0.0
      %v469 = vmax.f32 %v445, 0.0
      %v470 = vmax.f32 %v448, 0.0
      %v471 = vmax.f32 %v453, 0.0
      %v472 = vmax.f32 %v456, 0.0
      %v473 = vmax.f32 %v461, 0.0
      %v474 = vmax.f32 %v464, 0.0
      %vm475 = vcmask 130048
      %v476 = vsel %vm475, %v467, -inf
      %477 = vmax.xlane.f32.xlu0 %v476
      %v478 = vpop.xlane.xlu0 %477
      %v479 = vsel %vm475, %v468, -inf
      %480 = vmax.xlane.f32.xlu0 %v479
      %v481 = vpop.xlane.xlu0 %480
      %v482 = vsel %vm475, %v469, -inf
      %483 = vmax.xlane.f32.xlu0 %v482
      %v484 = vpop.xlane.xlu0 %483
      %v485 = vsel %vm475, %v470, -inf
      %486 = vmax.xlane.f32.xlu0 %v485
      %v487 = vpop.xlane.xlu0 %486
      %v488 = vsel %vm475, %v471, -inf
      %489 = vmax.xlane.f32.xlu0 %v488
      %v490 = vpop.xlane.xlu0 %489
      %v491 = vsel %vm475, %v472, -inf
      %492 = vmax.xlane.f32.xlu0 %v491
      %v493 = vpop.xlane.xlu0 %492
      %v494 = vsel %vm475, %v473, -inf
      %495 = vmax.xlane.f32.xlu0 %v494
      %v496 = vpop.xlane.xlu0 %495
      %v497 = vsel %vm475, %v474, -inf
      %498 = vmax.xlane.f32.xlu0 %v497
      %v499 = vpop.xlane.xlu0 %498
      %v500 = vld [vmem:[#allocation2] sm:$0xff]
      %v501 = vld [vmem:[#allocation2 + $0x8] sm:$0xff]
      %v502 = vld [vmem:[#allocation2 + $0x10] sm:$0xff]
      %v503 = vld [vmem:[#allocation2 + $0x18] sm:$0xff]
      %v504 = vld [vmem:[#allocation2 + $0x20] sm:$0xff]
      %v505 = vld [vmem:[#allocation2 + $0x28] sm:$0xff]
      %v506 = vld [vmem:[#allocation2 + $0x30] sm:$0xff]
      %v507 = vld [vmem:[#allocation2 + $0x38] sm:$0xff]
      %v508 = vmax.f32 %v500, %v478
      %v509 = vmax.f32 %v501, %v481
      %v510 = vmax.f32 %v502, %v484
      %v511 = vmax.f32 %v503, %v487
      %v512 = vmax.f32 %v504, %v490
      %v513 = vmax.f32 %v505, %v493
      %v514 = vmax.f32 %v506, %v496
      %v515 = vmax.f32 %v507, %v499
      %vm516 = vcmask 7168
      %517 = vst.msk [vmem:[#allocation2] sm:$0xff] %vm516, %v508
      %518 = vst.msk [vmem:[#allocation2 + $0x8] sm:$0xff] %vm516, %v509
      %519 = vst.msk [vmem:[#allocation2 + $0x10] sm:$0xff] %vm516, %v510
      %520 = vst.msk [vmem:[#allocation2 + $0x18] sm:$0xff] %vm516, %v511
      %521 = vst.msk [vmem:[#allocation2 + $0x20] sm:$0xff] %vm516, %v512
      %522 = vst.msk [vmem:[#allocation2 + $0x28] sm:$0xff] %vm516, %v513
      %523 = vst.msk [vmem:[#allocation2 + $0x30] sm:$0xff] %vm516, %v514
      %524 = vst.msk [vmem:[#allocation2 + $0x38] sm:$0xff] %vm516, %v515
      // Predicated region
      $region41: #{tpu_custom_call.1} parent=35 // pred_check
        %p525 = pneg %p219
      $region42: #{tpu_custom_call.1} parent=35 // pred_check_branch
        %527 = sbr.rel (%p525) target = $region44
      $region43: #{tpu_custom_call.1} parent=35 // pred_region
        %v528 = vld [vmem:[#allocation2] sm:$0xff]
        %v529 = vld [vmem:[#allocation2 + $0x8] sm:$0xff]
        %v530 = vld [vmem:[#allocation2 + $0x10] sm:$0xff]
        %v531 = vld [vmem:[#allocation2 + $0x18] sm:$0xff]
        %v532 = vld [vmem:[#allocation2 + $0x20] sm:$0xff]
        %v533 = vld [vmem:[#allocation2 + $0x28] sm:$0xff]
        %v534 = vld [vmem:[#allocation2 + $0x30] sm:$0xff]
        %v535 = vld [vmem:[#allocation2 + $0x38] sm:$0xff]
        %536 = vst.msk [vmem:[%s217] sm:$0xff] %vm516, %v528
        %537 = vst.msk [vmem:[%s217 + $0x8] sm:$0xff] %vm516, %v529
        %538 = vst.msk [vmem:[%s217 + $0x10] sm:$0xff] %vm516, %v530
        %539 = vst.msk [vmem:[%s217 + $0x18] sm:$0xff] %vm516, %v531
        %540 = vst.msk [vmem:[%s217 + $0x20] sm:$0xff] %vm516, %v532
        %541 = vst.msk [vmem:[%s217 + $0x28] sm:$0xff] %vm516, %v533
        %542 = vst.msk [vmem:[%s217 + $0x30] sm:$0xff] %vm516, %v534
        %543 = vst.msk [vmem:[%s217 + $0x38] sm:$0xff] %vm516, %v535
      $region44: #{tpu_custom_call.1} parent=35 // pred_fallthru
        _
      %p544 = scmp.lt.s32.totalorder %s19, 1
      %s545 = scalar_select %p544, %s19, 1
      %s546 = smul.addr %s545, 8
      %s547 = smul.addr %s546, 8
      %s548 = scalar_lea.vmem %s4, %s547
      // Predicated region
      $region45: #{tpu_custom_call.1} parent=35 // pred_check
        %p549 = pneg %p136
      $region46: #{tpu_custom_call.1} parent=35 // pred_check_branch
        %551 = sbr.rel (%p549) target = $region48
      $region47: #{tpu_custom_call.1} parent=35 // pred_region
        _
      $region48: #{tpu_custom_call.1} parent=35 // pred_fallthru
        _
    $region36: #{tpu_custom_call.1} parent=5 // pred_fallthru
      _
    %p552 = scmp.le.s32.totalorder 2, %s10
    // Predicated region
    $region49: #{tpu_custom_call.1} parent=5 // pred_check
      %p553 = pneg %p552
    $region50: #{tpu_custom_call.1} parent=5 // pred_check_branch
      %555 = sbr.rel (%p553) target = $region52
    $region51: #{tpu_custom_call.1} parent=5 // pred_region
      %s556 = ssub.s32 %s10, 2
      // Predicated region
      $region53: #{tpu_custom_call.1} parent=51 // pred_check
        %p557 = pneg %p142
      $region54: #{tpu_custom_call.1} parent=51 // pred_check_branch
        %559 = sbr.rel (%p557) target = $region56
      $region55: #{tpu_custom_call.1} parent=51 // pred_region
        %p560 = scmp.lt.s32.totalorder %s21, 1
        %s561 = scalar_select %p560, %s21, 1
        %s562 = smul.addr %s561, 8
        %s563 = smul.addr %s562, 8
        %s564 = scalar_lea.vmem %s4, %s563
      $region56: #{tpu_custom_call.1} parent=51 // pred_fallthru
        _
    $region52: #{tpu_custom_call.1} parent=5 // pred_fallthru
      _
  $region6: #{tpu_custom_call.1} parent=0 // loop_footer
    %s14 = sadd.s32 1, %s10
  $region7: #{tpu_custom_call.1} parent=0 // loop_footer_branch
    %9 = sbr.rel target = $region3
  $region8: #{tpu_custom_call.1} parent=0 // loop_exit
    _

</llo_original>
